<compile_context>
chip_gen: v7x
topology: tpu7x:2x2x1
jax: 0.10.0
libtpu: 0.0.40
codegen_flags: <defaults>
</compile_context>

<pallas_src>
import jax
import jax.numpy as jnp
from jax.experimental import pallas as pl
from jax.experimental.pallas import tpu as pltpu

_LN_EPS = 1e-5


def _layernorm_kernel(h_ref, z_ref):
    """z = (h - mean) * rsqrt(var + eps), stats in f32, output bf16.

    gamma/beta are folded into the LM-head weight/bias by the wrapper, so this
    runs the O(M*H) reduction + rsqrt exactly once per row (not once per vocab
    tile as before).
    """
    h = h_ref[...].astype(jnp.float32)
    mean = jnp.mean(h, axis=-1, keepdims=True)
    var = jnp.mean(jnp.square(h - mean), axis=-1, keepdims=True)
    z = (h - mean) * jax.lax.rsqrt(var + _LN_EPS)
    z_ref[...] = z.astype(z_ref.dtype)


def _lm_head_kernel(z_ref, w_ref, b_ref, o_ref):
    """Weight-streaming GEMM tile: logits = z @ W' + b'.

    z_ref: (TM, H)  normalized activations, bf16
    w_ref: (H, TN)  gamma-folded LM-head weight tile, bf16
    b_ref: (1, TN)  beta/bias-folded tile, f32
    o_ref: (TM, TN) logits tile, f32
    """
    o_ref[...] = (
        jnp.dot(z_ref[...], w_ref[...], preferred_element_type=jnp.float32)
        + b_ref[...]
    )


def _pick_block(dim, preferred):
    for c in preferred:
        if dim % c == 0:
            return c
    return dim


def sft_logits_forward(input_ids, params, *, vmem_limit_bytes=48 * 1024 * 1024):
    """Forward pass of the synthetic SFT model, returning `.logits`."""
    emb = params["embedding"]          # (V, H) f32
    gamma = params["ln_gamma"]         # (H,)
    beta = params["ln_beta"]           # (H,)
    w = params["lm_head_w"]            # (H, V)
    b = params["lm_head_b"]            # (V,)

    B, S = input_ids.shape
    V, H = emb.shape
    M = B * S

    # Glue: token-embedding gather in plain JAX.
    h = jnp.take(emb, input_ids.reshape(-1), axis=0)           # (M, H) f32

    # Host-side folds (zero in-kernel cost):
    #   logits = ((h-mu)*rsqrt(var)*gamma + beta) @ W + b
    #          = ((h-mu)*rsqrt(var)) @ (gamma[:,None]*W) + (beta @ W + b)
    w_folded = (gamma[:, None] * w).astype(jnp.bfloat16)        # (H, V) bf16
    b_folded = (beta @ w + b).reshape(1, V).astype(jnp.float32)  # (1, V) f32

    block_m = _pick_block(M, (512, 256, 128, 64, 32, 16))        # multiples of 16 (bf16 sublane)
    block_v = _pick_block(V, (512, 256, 128))

    # Pass 1: LayerNorm statistics, once per row, tiled over M.
    z = pl.pallas_call(
        _layernorm_kernel,
        out_shape=jax.ShapeDtypeStruct((M, H), jnp.bfloat16),
        grid_spec=pltpu.PrefetchScalarGridSpec(
            num_scalar_prefetch=0,
            grid=(M // block_m,),
            in_specs=[pl.BlockSpec((block_m, H), lambda i: (i, 0))],
            out_specs=pl.BlockSpec((block_m, H), lambda i: (i, 0)),
        ),
        compiler_params=pltpu.CompilerParams(
            dimension_semantics=("parallel",),
            vmem_limit_bytes=vmem_limit_bytes,
        ),
    )(h)

    # Pass 2: weight-streaming bf16 GEMM over (M, V) tiles, lane-dense f32 out.
    logits_flat = pl.pallas_call(
        _lm_head_kernel,
        out_shape=jax.ShapeDtypeStruct((M, V), jnp.float32),
        grid_spec=pltpu.PrefetchScalarGridSpec(
            num_scalar_prefetch=0,
            grid=(M // block_m, V // block_v),
            in_specs=[
                pl.BlockSpec((block_m, H), lambda i, j: (i, 0)),   # z tile (bf16)
                pl.BlockSpec((H, block_v), lambda i, j: (0, j)),   # W' tile (bf16)
                pl.BlockSpec((1, block_v), lambda i, j: (0, j)),   # b' tile (f32)
            ],
            out_specs=pl.BlockSpec((block_m, block_v), lambda i, j: (i, j)),
        ),
        compiler_params=pltpu.CompilerParams(
            dimension_semantics=("parallel", "parallel"),
            vmem_limit_bytes=vmem_limit_bytes,
        ),
    )(z, w_folded, b_folded)

    return logits_flat.reshape(B, S, V)


def init_params(key, *, vocab=512, hidden=128):
    k1, k2, _ = jax.random.split(key, 3)
    return {
        "embedding": jax.random.normal(k1, (vocab, hidden), jnp.float32) * 0.02,
        "ln_gamma": jnp.ones((hidden,), jnp.float32),
        "ln_beta": jnp.zeros((hidden,), jnp.float32),
        "lm_head_w": jax.random.normal(k2, (hidden, vocab), jnp.float32) * 0.02,
        "lm_head_b": jnp.zeros((vocab,), jnp.float32),
    }


if __name__ == "__main__":
    # TODO(synk): the real SFTLogitsModel wraps an arbitrary HF causal LM; only a
    # representative tiny LM (embedding -> final LN -> LM head) is implemented.
    key = jax.random.PRNGKey(0)
    pkey, dkey = jax.random.split(key)

    VOCAB, HIDDEN = 512, 128
    B, S = 2, 8

    params = init_params(pkey, vocab=VOCAB, hidden=HIDDEN)
    input_ids = jax.random.randint(dkey, (B, S), 0, VOCAB, dtype=jnp.int32)

    logits = sft_logits_forward(input_ids, params)
    logits = jax.block_until_ready(logits)

    assert logits.shape == (B, S, VOCAB)
    assert logits.dtype == jnp.float32

    # Reference 1: same math as the kernels (bf16 matmul operands, f32 acc).
    h = jnp.take(params["embedding"], input_ids.reshape(-1), axis=0)
    mean = jnp.mean(h, axis=-1, keepdims=True)
    var = jnp.mean(jnp.square(h - mean), axis=-1, keepdims=True)
    z_bf16 = ((h - mean) * jax.lax.rsqrt(var + _LN_EPS)).astype(jnp.bfloat16)
    w_bf16 = (params["ln_gamma"][:, None] * params["lm_head_w"]).astype(jnp.bfloat16)
    b_fold = params["ln_beta"] @ params["lm_head_w"] + params["lm_head_b"]
    ref_bf16 = (
        jnp.dot(z_bf16, w_bf16, preferred_element_type=jnp.float32) + b_fold
    ).reshape(B, S, VOCAB)
    assert jnp.allclose(logits, ref_bf16, atol=2e-3, rtol=2e-3)

    # Reference 2 (loose): the original full-f32 LayerNorm + LM-head semantics.
    h_norm = (h - mean) * jax.lax.rsqrt(var + _LN_EPS)
    h_norm = h_norm * params["ln_gamma"] + params["ln_beta"]
    ref_f32 = (h_norm @ params["lm_head_w"] + params["lm_head_b"]).reshape(B, S, VOCAB)
    assert jnp.allclose(logits, ref_f32, atol=3e-2, rtol=3e-2)

    print("KERNEL_OK")
</pallas_src>

<mosaic_0001>
module attributes {stable_mosaic.version = 11 : i64} {
  func.func @_layernorm_kernel(%arg0: i32, %arg1: memref<16x128xf32, #tpu.memory_space<vmem>>, %arg2: memref<16x128xbf16, #tpu.memory_space<vmem>>) attributes {dimension_semantics = [#tpu.dimension_semantics<parallel>], iteration_bounds = array<i64: 1>, scalar_prefetch = 0 : i64, scratch_operands = 0 : i64, tpu.core_type = #tpu.core_type<tc>, window_params = [{transform_indices = @transform_0, window_bounds = array<i64: 16, 128>}, {transform_indices = @transform_1, window_bounds = array<i64: 16, 128>}]} {
    %c0 = arith.constant 0 : index
    %c0_0 = arith.constant 0 : index
    %0 = vector.load %arg1[%c0, %c0_0] : memref<16x128xf32, #tpu.memory_space<vmem>>, vector<16x128xf32>
    %cst = arith.constant dense<0.000000e+00> : vector<16xf32>
    %1 = vector.multi_reduction <add>, %0, %cst [1] : vector<16x128xf32> to vector<16xf32>
    %2 = vector.shape_cast %1 : vector<16xf32> to vector<16x1xf32>
    %cst_1 = arith.constant 1.280000e+02 : f32
    %3 = vector.broadcast %cst_1 : f32 to vector<16x1xf32>
    %4 = arith.divf %2, %3 : vector<16x1xf32>
    %5 = vector.broadcast %4 : vector<16x1xf32> to vector<16x128xf32>
    %6 = arith.subf %0, %5 : vector<16x128xf32>
    %7 = arith.mulf %6, %6 : vector<16x128xf32>
    %cst_2 = arith.constant dense<0.000000e+00> : vector<16xf32>
    %8 = vector.multi_reduction <add>, %7, %cst_2 [1] : vector<16x128xf32> to vector<16xf32>
    %9 = vector.shape_cast %8 : vector<16xf32> to vector<16x1xf32>
    %cst_3 = arith.constant 1.280000e+02 : f32
    %10 = vector.broadcast %cst_3 : f32 to vector<16x1xf32>
    %11 = arith.divf %9, %10 : vector<16x1xf32>
    %12 = vector.broadcast %4 : vector<16x1xf32> to vector<16x128xf32>
    %13 = arith.subf %0, %12 : vector<16x128xf32>
    %cst_4 = arith.constant 9.99999974E-6 : f32
    %14 = vector.broadcast %cst_4 : f32 to vector<16x1xf32>
    %15 = arith.addf %11, %14 : vector<16x1xf32>
    %16 = math.rsqrt %15 : vector<16x1xf32>
    %17 = vector.broadcast %16 : vector<16x1xf32> to vector<16x128xf32>
    %18 = arith.mulf %13, %17 : vector<16x128xf32>
    %19 = arith.truncf %18 : vector<16x128xf32> to vector<16x128xbf16>
    %c0_5 = arith.constant 0 : index
    %c0_6 = arith.constant 0 : index
    %20 = vector.load %arg2[%c0_5, %c0_6] : memref<16x128xbf16, #tpu.memory_space<vmem>>, vector<16x128xbf16>
    tpu.vector_store %arg2[%c0_5, %c0_6], %19 {strides = array<i32>} : memref<16x128xbf16, #tpu.memory_space<vmem>>, vector<16x128xbf16>,
    return
  }
  func.func @transform_0(%arg0: i32) -> (i32, i32) {
    %c0_i32 = arith.constant 0 : i32
    %c0_i32_0 = arith.constant 0 : i32
    return %arg0, %c0_i32 : i32, i32
  }
  func.func @transform_1(%arg0: i32) -> (i32, i32) {
    %c0_i32 = arith.constant 0 : i32
    %c0_i32_0 = arith.constant 0 : i32
    return %arg0, %c0_i32 : i32, i32
  }
}

</mosaic_0001>

<llo_original>
// kernel: tpu_custom_call.1
$region0: #{tpu_custom_call.1}
  #allocation0 [shape = 'u32[]', space=smem, size = 0x4, offset = 0x4, fixed_abs, tag = 'smem constant byte address 0x4 - core index']
  #allocation1 [shape = 'u32[144,128]{1,0:T(1,128)}', space=vmem, size = 0x12000, scoped, tag = 'internal scratch']
  %s0 = inlined_call_operand.hbm [shape: f32[16,128], index: 0, kind: input, shape index: {}]
  %s1 = inlined_call_operand.hbm [shape: bf16[16,128], index: 1, kind: output, shape index: {}]
  %s2 = sld [smem:[#allocation0]]
  $region18: #{tpu_custom_call.1} parent=0
    _
  %s4 = ssub.s32 1, %s2
  %s5 = scalar_select 0, %s4, %s2
  $region1: #{tpu_custom_call.1} parent=0
    #allocation2 [shape = 'u8[8192]{0}', space=vmem, size = 0x2000, scoped, tag = 'input window, operand 0, single buffered']
    #allocation3 [shape = 's32[1]{0}', space=sflag, size = 0x4, scoped, tag = 'scoped memory for tpu_custom_call.1']
    #allocation4 [shape = 's32[1]{0}', space=sflag, size = 0x4, scoped, tag = 'scoped memory for tpu_custom_call.1']
    #allocation5 [shape = 'u8[4096]{0}', space=vmem, size = 0x1000, scoped, tag = 'output window, operand 0, single buffered']
    %6 = vsyncpa [#allocation3], 0
    %7 = vsyncpa [#allocation4], 0
    // Predicated region
    $region2: #{tpu_custom_call.1} parent=1 // pred_check
      _
    $region3: #{tpu_custom_call.1} parent=1 // pred_check_branch
      %9 = sbr.rel (0) target = $region5
    $region4: #{tpu_custom_call.1} parent=1 // pred_region
      %s11 = ssub.s32 256, 256
      %12 = vsyncadd [#allocation3], %s11
      %s13 = sshll.u32 [#allocation2], 4
      %s14 = int_to_ptr.vmem [resolvable:$true] %s13
      %19 = dma.hbm_to_vmem [thread:$0]  %s0, 256, %s14, [#allocation3], 128, 128, 8
    $region5: #{tpu_custom_call.1} parent=1 // pred_fallthru
      _
    // Predicated region
    $region6: #{tpu_custom_call.1} parent=1 // pred_check
      _
    $region7: #{tpu_custom_call.1} parent=1 // pred_check_branch
      %21 = sbr.rel (0) target = $region9
    $region8: #{tpu_custom_call.1} parent=1 // pred_region
      %22 = dma.done [#allocation3], 256
    $region9: #{tpu_custom_call.1} parent=1 // pred_fallthru
      _
    %v23 = vld [vmem:[#allocation2] sm:$0xff]
    %v24 = vld [vmem:[#allocation2 + $0x8] sm:$0xff]
    %25 = vadd.xlane.f32.xlu0 %v23
    %v26 = vpop.xlane.xlu0 %25
    %27 = vadd.xlane.f32.xlu0 %v24
    %v28 = vpop.xlane.xlu0 %27
    %v29 = vrcp.pop 128.0
    %v30 = vmul.f32 %v26, %v29
    %v31 = vmul.f32 %v28, %v29
    %v32 = vsub.f32 %v23, %v30
    %v33 = vsub.f32 %v24, %v31
    %v34 = vmul.f32 %v32, %v32
    %v35 = vmul.f32 %v33, %v33
    %36 = vadd.xlane.f32.xlu0 %v34
    %v37 = vpop.xlane.xlu0 %36
    %38 = vadd.xlane.f32.xlu0 %v35
    %v39 = vpop.xlane.xlu0 %38
    %v40 = vmul.f32 %v37, %v29
    %v41 = vmul.f32 %v39, %v29
    %v42 = vadd.f32 %v40, 1e-05
    %v43 = vadd.f32 %v41, 1e-05
    %v44 = vrsqrt.pop %v42
    %v45 = vrsqrt.pop %v43
    %v46 = vmul.f32 %v32, %v44
    %v47 = vmul.f32 %v33, %v45
    %v48 = vpack.c.bf16 %v47, %v46
    %v50 = vunpack.c.l.b16 %v48
    %v51 = vunpack.c.h.b16 %v48
    %v52 = vpack.c.b16 %v50, %v50
    %v53 = vpack.c.b16 %v51, %v51
    %56 = vst [vmem:[#allocation5] sm:$0xf] %v52
    %57 = vst [vmem:[#allocation5 + $0x4] sm:$0xf] %v53
    // Predicated region
    $region10: #{tpu_custom_call.1} parent=1 // pred_check
      _
    $region11: #{tpu_custom_call.1} parent=1 // pred_check_branch
      %59 = sbr.rel (0) target = $region13
    $region12: #{tpu_custom_call.1} parent=1 // pred_region
      %s61 = ssub.s32 128, 128
      %62 = vsyncadd [#allocation4], %s61
      %s63 = sshll.u32 [#allocation5], 4
      %s64 = int_to_ptr.vmem [resolvable:$true] %s63
      %69 = dma.vmem_to_hbm [thread:$0]  %s64, 128, %s1, [#allocation4], 64, 64, 4
    $region13: #{tpu_custom_call.1} parent=1 // pred_fallthru
      _
    // Predicated region
    $region14: #{tpu_custom_call.1} parent=1 // pred_check
      _
    $region15: #{tpu_custom_call.1} parent=1 // pred_check_branch
      %71 = sbr.rel (0) target = $region17
    $region16: #{tpu_custom_call.1} parent=1 // pred_region
      %72 = dma.done [#allocation4], 128
    $region17: #{tpu_custom_call.1} parent=1 // pred_fallthru
      _
    %73 = vsyncpa [#allocation3], 1
    %74 = vsyncpa [#allocation4], 1

</llo_original>
